<compile_context>
chip_gen: v7x
topology: tpu7x:2x2x1
jax: 0.10.0
libtpu: 0.0.40
codegen_flags: <defaults>
</compile_context>

<pallas_src>
import functools

import jax
import jax.numpy as jnp
from jax.experimental import pallas as pl
from jax.experimental.pallas import tpu as pltpu


def _round_up(x, m):
    return (x + m - 1) // m * m


def _choose_tile(batch, block_b):
    """Batch tile: multiple of 8, >=2 blocks when possible, capped at block_b."""
    if batch <= 8:
        return batch                       # single block == full array dim
    tb = _round_up(pl.cdiv(batch, 2), 8)   # aim for (at least) 2 blocks
    tb = min(tb, _round_up(block_b, 8))
    return max(tb, 8)


def _leaf_kernel(x_ref, w_ref, b_ref, c_ref, h_ref, *, mem_pad, mem_dim):
    x = x_ref[...]                                               # (TB, in_dim)
    # Single fused MXU matmul with f32 accumulation; bias add in f32.
    lin = jnp.dot(x, w_ref[...], preferred_element_type=jnp.float32) + b_ref[...]
    c = lin[:, :mem_dim]                                         # c half
    o_in = lin[:, mem_pad:mem_pad + mem_dim]                     # lane-aligned o half
    h = jax.nn.sigmoid(o_in) * jnp.tanh(c)                       # EUP + VPU
    c_ref[...] = c.astype(c_ref.dtype)
    h_ref[...] = h.astype(h_ref.dtype)


def fuse_leaf_params(wc, bc, wo, bo, *, compute_dtype=jnp.float32):
    """Build the fused [Wc | Wo] slab ONCE (hoisted out of the per-call path).

    wc/wo: (in_dim, mem_dim) (pre-transposed vs. torch Linear); bc/bo: (1, mem_dim).
    Returns (w_fused, b_fused, mem_dim) where each half of w_fused is padded to
    a 128-lane boundary so the in-kernel split at `mem_pad` is lane-aligned.
    """
    in_dim, mem_dim = wc.shape
    mem_pad = _round_up(mem_dim, 128)
    w = jnp.zeros((in_dim, 2 * mem_pad), compute_dtype)
    w = w.at[:, :mem_dim].set(wc.astype(compute_dtype))
    w = w.at[:, mem_pad:mem_pad + mem_dim].set(wo.astype(compute_dtype))
    b = jnp.zeros((1, 2 * mem_pad), jnp.float32)
    b = b.at[:, :mem_dim].set(jnp.reshape(bc, (1, mem_dim)).astype(jnp.float32))
    b = b.at[:, mem_pad:mem_pad + mem_dim].set(
        jnp.reshape(bo, (1, mem_dim)).astype(jnp.float32))
    return w, b, mem_dim


def binary_tree_leaf_forward(x, w_fused, b_fused, mem_dim, *, block_b=1024,
                             compute_dtype=jnp.float32, out_dtype=jnp.float32):
    """Batched leaf forward.

    x: (B, in_dim); w_fused/b_fused from fuse_leaf_params (built in compute_dtype).
    Returns (c, h), each (B, mem_dim) in out_dtype — no padding, no extra slice.
    """
    B, in_dim = x.shape
    two_mem_pad = w_fused.shape[1]
    mem_pad = two_mem_pad // 2

    tb = _choose_tile(B, block_b)
    num_blocks = pl.cdiv(B, tb)

    x_c = x.astype(compute_dtype)

    kernel = functools.partial(_leaf_kernel, mem_pad=mem_pad, mem_dim=mem_dim)

    in_item = jnp.dtype(compute_dtype).itemsize
    out_item = jnp.dtype(out_dtype).itemsize
    cost = pl.CostEstimate(
        flops=2 * B * in_dim * two_mem_pad,
        transcendentals=2 * B * mem_dim,
        bytes_accessed=(B * in_dim * in_item
                        + in_dim * two_mem_pad * in_item
                        + two_mem_pad * 4
                        + 2 * B * mem_dim * out_item),
    )

    c, h = pl.pallas_call(
        kernel,
        out_shape=(
            jax.ShapeDtypeStruct((B, mem_dim), out_dtype),
            jax.ShapeDtypeStruct((B, mem_dim), out_dtype),
        ),
        grid=(num_blocks,),
        in_specs=[
            # x: one (TB, in_dim) tile per grid step (ragged last block masked)
            pl.BlockSpec((tb, in_dim), lambda i: (i, 0)),
            # fused weights / bias: constant index_map -> resident in VMEM
            pl.BlockSpec((in_dim, two_mem_pad), lambda i: (0, 0)),
            pl.BlockSpec((1, two_mem_pad), lambda i: (0, 0)),
        ],
        out_specs=(
            pl.BlockSpec((tb, mem_dim), lambda i: (i, 0)),
            pl.BlockSpec((tb, mem_dim), lambda i: (i, 0)),
        ),
        compiler_params=pltpu.CompilerParams(
            dimension_semantics=("parallel",),
        ),
        cost_estimate=cost,
    )(x_c, w_fused, b_fused)

    return c, h


def init_params(key, in_dim, mem_dim):
    """Deterministic init mimicking nn.Linear default (uniform +/- 1/sqrt(in_dim))."""
    k1, k2, k3, k4 = jax.random.split(key, 4)
    bound = 1.0 / jnp.sqrt(in_dim)
    wc = jax.random.uniform(k1, (in_dim, mem_dim), jnp.float32, -bound, bound)
    bc = jax.random.uniform(k2, (1, mem_dim), jnp.float32, -bound, bound)
    wo = jax.random.uniform(k3, (in_dim, mem_dim), jnp.float32, -bound, bound)
    bo = jax.random.uniform(k4, (1, mem_dim), jnp.float32, -bound, bound)
    return wc, bc, wo, bo


if __name__ == "__main__":
    # Many leaves batched into one call; B=200 exercises the 2-block
    # (v7x megacore) path plus the ragged (masked) last block.
    batch, in_dim, mem_dim = 200, 32, 32

    key = jax.random.PRNGKey(0)
    kx, kp = jax.random.split(key)
    x = jax.random.normal(kx, (batch, in_dim), jnp.float32)
    wc, bc, wo, bo = init_params(kp, in_dim, mem_dim)

    # Fused weight slab built ONCE (hoisted off the per-call path).
    w_fused, b_fused, mdim = fuse_leaf_params(wc, bc, wo, bo)

    c, h = binary_tree_leaf_forward(x, w_fused, b_fused, mdim)
    jax.block_until_ready((c, h))

    # Pure-JAX reference check of forward semantics.
    c_ref = x @ wc + bc
    h_ref = jax.nn.sigmoid(x @ wo + bo) * jnp.tanh(c_ref)
    assert c.shape == (batch, mem_dim) and h.shape == (batch, mem_dim)
    assert jnp.allclose(c, c_ref, atol=1e-5), "c mismatch"
    assert jnp.allclose(h, h_ref, atol=1e-5), "h mismatch"

    print("KERNEL_OK")
</pallas_src>

<mosaic_0001>
module attributes {stable_mosaic.version = 11 : i64} {
  func.func @_leaf_kernel(%arg0: i32, %arg1: memref<104x32xf32, #tpu.memory_space<vmem>>, %arg2: memref<32x256xf32, #tpu.memory_space<vmem>>, %arg3: memref<1x256xf32, #tpu.memory_space<vmem>>, %arg4: memref<104x32xf32, #tpu.memory_space<vmem>>, %arg5: memref<104x32xf32, #tpu.memory_space<vmem>>) attributes {dimension_semantics = [#tpu.dimension_semantics<parallel>], iteration_bounds = array<i64: 2>, scalar_prefetch = 0 : i64, scratch_operands = 0 : i64, tpu.core_type = #tpu.core_type<tc>, window_params = [{transform_indices = @transform_0, window_bounds = array<i64: 104, 32>}, {pipeline_mode = #tpu.pipeline_mode<synchronous>, transform_indices = @transform_1, window_bounds = array<i64: 32, 256>}, {pipeline_mode = #tpu.pipeline_mode<synchronous>, transform_indices = @transform_2, window_bounds = array<i64: 1, 256>}, {transform_indices = @transform_3, window_bounds = array<i64: 104, 32>}, {transform_indices = @transform_4, window_bounds = array<i64: 104, 32>}]} {
    %c0 = arith.constant 0 : index
    %c0_0 = arith.constant 0 : index
    %0 = vector.load %arg1[%c0, %c0_0] : memref<104x32xf32, #tpu.memory_space<vmem>>, vector<104x32xf32>
    %c0_1 = arith.constant 0 : index
    %c0_2 = arith.constant 0 : index
    %1 = vector.load %arg2[%c0_1, %c0_2] : memref<32x256xf32, #tpu.memory_space<vmem>>, vector<32x256xf32>
    %cst = arith.constant dense<0.000000e+00> : vector<104x256xf32>
    %2 = tpu.matmul %0, %1, %cst {dimension_numbers = #tpu.dot_dimension_numbers<[1], [0], [0], [1], [0, 0, 1, 1], [], []>} : vector<104x32xf32>, vector<32x256xf32>, vector<104x256xf32> -> vector<104x256xf32>
    %c0_3 = arith.constant 0 : index
    %c0_4 = arith.constant 0 : index
    %3 = vector.load %arg3[%c0_3, %c0_4] : memref<1x256xf32, #tpu.memory_space<vmem>>, vector<1x256xf32>
    %4 = vector.broadcast %3 : vector<1x256xf32> to vector<104x256xf32>
    %5 = arith.addf %2, %4 : vector<104x256xf32>
    %6 = vector.extract_strided_slice %5 {offsets = [0, 0], sizes = [104, 32], strides = [1, 1]} : vector<104x256xf32> to vector<104x32xf32>
    %7 = vector.extract_strided_slice %5 {offsets = [0, 128], sizes = [104, 32], strides = [1, 1]} : vector<104x256xf32> to vector<104x32xf32>
    %8 = arith.negf %7 : vector<104x32xf32>
    %9 = math.exp %8 : vector<104x32xf32>
    %cst_5 = arith.constant 1.000000e+00 : f32
    %10 = vector.broadcast %cst_5 : f32 to vector<104x32xf32>
    %11 = arith.addf %10, %9 : vector<104x32xf32>
    %12 = arith.divf %10, %11 : vector<104x32xf32>
    %13 = math.tanh %6 : vector<104x32xf32>
    %14 = arith.mulf %12, %13 : vector<104x32xf32>
    %c0_6 = arith.constant 0 : index
    %c0_7 = arith.constant 0 : index
    %15 = vector.load %arg4[%c0_6, %c0_7] : memref<104x32xf32, #tpu.memory_space<vmem>>, vector<104x32xf32>
    tpu.vector_store %arg4[%c0_6, %c0_7], %6 {strides = array<i32>} : memref<104x32xf32, #tpu.memory_space<vmem>>, vector<104x32xf32>,
    %c0_8 = arith.constant 0 : index
    %c0_9 = arith.constant 0 : index
    %16 = vector.load %arg5[%c0_8, %c0_9] : memref<104x32xf32, #tpu.memory_space<vmem>>, vector<104x32xf32>
    tpu.vector_store %arg5[%c0_8, %c0_9], %14 {strides = array<i32>} : memref<104x32xf32, #tpu.memory_space<vmem>>, vector<104x32xf32>,
    return
  }
  func.func @transform_0(%arg0: i32) -> (i32, i32) {
    %c0_i32 = arith.constant 0 : i32
    %c0_i32_0 = arith.constant 0 : i32
    return %arg0, %c0_i32 : i32, i32
  }
  func.func @transform_1(%arg0: i32) -> (i32, i32) {
    %c0_i32 = arith.constant 0 : i32
    %c0_i32_0 = arith.constant 0 : i32
    %c0_i32_1 = arith.constant 0 : i32
    return %c0_i32, %c0_i32_0 : i32, i32
  }
  func.func @transform_2(%arg0: i32) -> (i32, i32) {
    %c0_i32 = arith.constant 0 : i32
    %c0_i32_0 = arith.constant 0 : i32
    %c0_i32_1 = arith.constant 0 : i32
    return %c0_i32, %c0_i32_0 : i32, i32
  }
  func.func @transform_3(%arg0: i32) -> (i32, i32) {
    %c0_i32 = arith.constant 0 : i32
    %c0_i32_0 = arith.constant 0 : i32
    return %arg0, %c0_i32 : i32, i32
  }
  func.func @transform_4(%arg0: i32) -> (i32, i32) {
    %c0_i32 = arith.constant 0 : i32
    %c0_i32_0 = arith.constant 0 : i32
    return %arg0, %c0_i32 : i32, i32
  }
}

</mosaic_0001>

<llo_original>
// kernel: tpu_custom_call.1
$region0: #{tpu_custom_call.1}
  #allocation0 [shape = 'u32[]', space=smem, size = 0x4, offset = 0x4, fixed_abs, tag = 'smem constant byte address 0x4 - core index']
  #allocation1 [shape = 'u32[144,128]{1,0:T(1,128)}', space=vmem, size = 0x12000, scoped, tag = 'internal scratch']
  %s0 = inlined_call_operand.vmem [shape: f32[200,32], index: 0, kind: input, shape index: {}]
  %s1 = inlined_call_operand.vmem [shape: f32[32,256], index: 1, kind: input, shape index: {}]
  %s2 = inlined_call_operand.vmem [shape: f32[1,256], index: 2, kind: input, shape index: {}]
  %s3 = inlined_call_operand.vmem [shape: f32[200,32], index: 3, kind: output, shape index: {0}]
  %s4 = inlined_call_operand.vmem [shape: f32[200,32], index: 4, kind: output, shape index: {1}]
  %5 = xla_tuple %s3, %s4
  %s6 = sld [smem:[#allocation0]]
  $region149: #{tpu_custom_call.1} parent=0
    _
  %s8 = ssub.s32 1, %s6
  %s9 = scalar_select 0, %s8, %s6
  $region1: #{tpu_custom_call.1} parent=0
    #allocation2 [shape = 'u8[106496]{0}', space=vmem, size = 0x1a000, scoped, tag = 'output window, operand 0']
    #allocation3 [shape = 'u8[106496]{0}', space=vmem, size = 0x1a000, scoped, tag = 'output window, operand 1']
    loop: start=0, step=1, limit=4
    $region2: #{tpu_custom_call.1} parent=1 // loop_pre_header
      _
    $region3: #{tpu_custom_call.1} parent=1 // loop_header
      %s11 = sphi 0, %s15
      %p12 = scmp.ge.s32.totalorder %s11, 4
      %s21 = sphi 0, %s23
      %s24 = sphi 0, %s21
      %s25 = sphi 0, %s24
      %s41 = sphi 0, %s25
      %s45 = sphi 0, %s45
      %s47 = sphi 0, %s45
      %s48 = sphi 0, %s47
      %s62 = sphi 0, %s48
      %s66 = sphi 0, %s66
      %s68 = sphi 0, %s66
      %s69 = sphi 0, %s68
      %s83 = sphi 0, %s69
      %s89 = sphi 0, %s91
      %s92 = sphi 0, %s89
      %s93 = sphi 0, %s92
      %s109 = sphi 0, %s93
      %s115 = sphi 0, %s117
      %s118 = sphi 0, %s115
      %s119 = sphi 0, %s118
      %s135 = sphi 0, %s119
    $region4: #{tpu_custom_call.1} parent=1 // loop_header_branch
      %14 = sbr.rel (%p12) target = $region8
    $region5: #{tpu_custom_call.1} parent=1 // loop_body
      %s16 = ssub.s32 %s11, 1
      %s17 = ssub.s32 %s11, 2
      %s18 = sadd.s32 %s11, 1
      %s19 = ssub.s32 %s11, %s18
      %p20 = scmp.eq.s32.totalorder %s19, 0
      %s22 = sadd.s32 %s21, 1
      %s23 = scalar_select %p20, %s21, %s22
      %p26 = pneg %p20
      %p27 = scmp.eq.s32.totalorder %s11, 1
      %p28 = por %p26, %p27
      %p29 = scmp.ne.s32.totalorder %s21, %s24
      %p30 = scmp.eq.s32.totalorder %s11, 0
      %p31 = por %p29, %p30
      %p32 = scmp.ne.s32.totalorder %s21, %s24
      %p33 = scmp.eq.s32.totalorder %s16, 1
      %p34 = por %p32, %p33
      %p35 = scmp.ne.s32.totalorder %s24, %s25
      %p36 = scmp.eq.s32.totalorder %s16, 0
      %p37 = por %p35, %p36
      %p38 = scmp.ne.s32.totalorder %s24, %s25
      %p39 = scmp.eq.s32.totalorder %s17, 1
      %p40 = por %p38, %p39
      %p42 = scmp.ne.s32.totalorder %s25, %s41
      %p43 = scmp.eq.s32.totalorder %s17, 0
      %p44 = por %p42, %p43
      %s46 = sadd.s32 %s45, 1
      %p49 = scmp.eq.s32.totalorder %s11, 1
      %p50 = scmp.ne.s32.totalorder %s45, %s47
      %p51 = scmp.eq.s32.totalorder %s11, 0
      %p52 = por %p50, %p51
      %p53 = scmp.ne.s32.totalorder %s45, %s47
      %p54 = scmp.eq.s32.totalorder %s16, 1
      %p55 = por %p53, %p54
      %p56 = scmp.ne.s32.totalorder %s47, %s48
      %p57 = scmp.eq.s32.totalorder %s16, 0
      %p58 = por %p56, %p57
      %p59 = scmp.ne.s32.totalorder %s47, %s48
      %p60 = scmp.eq.s32.totalorder %s17, 1
      %p61 = por %p59, %p60
      %p63 = scmp.ne.s32.totalorder %s48, %s62
      %p64 = scmp.eq.s32.totalorder %s17, 0
      %p65 = por %p63, %p64
      %s67 = sadd.s32 %s66, 1
      %p70 = scmp.eq.s32.totalorder %s11, 1
      %p71 = scmp.ne.s32.totalorder %s66, %s68
      %p72 = scmp.eq.s32.totalorder %s11, 0
      %p73 = por %p71, %p72
      %p74 = scmp.ne.s32.totalorder %s66, %s68
      %p75 = scmp.eq.s32.totalorder %s16, 1
      %p76 = por %p74, %p75
      %p77 = scmp.ne.s32.totalorder %s68, %s69
      %p78 = scmp.eq.s32.totalorder %s16, 0
      %p79 = por %p77, %p78
      %p80 = scmp.ne.s32.totalorder %s68, %s69
      %p81 = scmp.eq.s32.totalorder %s17, 1
      %p82 = por %p80, %p81
      %p84 = scmp.ne.s32.totalorder %s69, %s83
      %p85 = scmp.eq.s32.totalorder %s17, 0
      %p86 = por %p84, %p85
      %s87 = ssub.s32 %s11, %s18
      %p88 = scmp.eq.s32.totalorder %s87, 0
      %s90 = sadd.s32 %s89, 1
      %s91 = scalar_select %p88, %s89, %s90
      %p94 = pneg %p88
      %p95 = scmp.eq.s32.totalorder %s11, 1
      %p96 = por %p94, %p95
      %p97 = scmp.ne.s32.totalorder %s89, %s92
      %p98 = scmp.eq.s32.totalorder %s11, 0
      %p99 = por %p97, %p98
      %p100 = scmp.ne.s32.totalorder %s89, %s92
      %p101 = scmp.eq.s32.totalorder %s16, 1
      %p102 = por %p100, %p101
      %p103 = scmp.ne.s32.totalorder %s92, %s93
      %p104 = scmp.eq.s32.totalorder %s16, 0
      %p105 = por %p103, %p104
      %p106 = scmp.ne.s32.totalorder %s92, %s93
      %p107 = scmp.eq.s32.totalorder %s17, 1
      %p108 = por %p106, %p107
      %p110 = scmp.ne.s32.totalorder %s93, %s109
      %p111 = scmp.eq.s32.totalorder %s17, 0
      %p112 = por %p110, %p111
      %s113 = ssub.s32 %s11, %s18
      %p114 = scmp.eq.s32.totalorder %s113, 0
      %s116 = sadd.s32 %s115, 1
      %s117 = scalar_select %p114, %s115, %s116
      %p120 = pneg %p114
      %p121 = scmp.eq.s32.totalorder %s11, 1
      %p122 = por %p120, %p121
      %p123 = scmp.ne.s32.totalorder %s115, %s118
      %p124 = scmp.eq.s32.totalorder %s11, 0
      %p125 = por %p123, %p124
      %p126 = scmp.ne.s32.totalorder %s115, %s118
      %p127 = scmp.eq.s32.totalorder %s16, 1
      %p128 = por %p126, %p127
      %p129 = scmp.ne.s32.totalorder %s118, %s119
      %p130 = scmp.eq.s32.totalorder %s16, 0
      %p131 = por %p129, %p130
      %p132 = scmp.ne.s32.totalorder %s118, %s119
      %p133 = scmp.eq.s32.totalorder %s17, 1
      %p134 = por %p132, %p133
      %p136 = scmp.ne.s32.totalorder %s119, %s135
      %p137 = scmp.eq.s32.totalorder %s17, 0
      %p138 = por %p136, %p137
      %p139 = scmp.le.s32.totalorder 1, %s11
      %p140 = scmp.lt.s32.totalorder %s11, 3
      %p141 = pnand %p139, %p140
      %p142 = pneg %p141
      // Predicated region
      $region9: #{tpu_custom_call.1} parent=5 // pred_check
        _
      $region10: #{tpu_custom_call.1} parent=5 // pred_check_branch
        %144 = sbr.rel (%p141) target = $region12
      $region11: #{tpu_custom_call.1} parent=5 // pred_region
        %s145 = ssub.s32 %s11, 1
        // Predicated region
        $region13: #{tpu_custom_call.1} parent=11 // pred_check
          %p146 = pneg %p58
        $region14: #{tpu_custom_call.1} parent=11 // pred_check_branch
          %148 = sbr.rel (%p146) target = $region16
        $region15: #{tpu_custom_call.1} parent=11 // pred_region
          _
        $region16: #{tpu_custom_call.1} parent=11 // pred_fallthru
          _
        // Predicated region
        $region17: #{tpu_custom_call.1} parent=11 // pred_check
          %p149 = pneg %p79
        $region18: #{tpu_custom_call.1} parent=11 // pred_check_branch
          %151 = sbr.rel (%p149) target = $region20
        $region19: #{tpu_custom_call.1} parent=11 // pred_region
          _
        $region20: #{tpu_custom_call.1} parent=11 // pred_fallthru
          _
      $region12: #{tpu_custom_call.1} parent=5 // pred_fallthru
        _
      %p152 = scmp.lt.s32.totalorder %s11, 2
      // Predicated region
      $region21: #{tpu_custom_call.1} parent=5 // pred_check
        %p153 = pneg %p152
      $region22: #{tpu_custom_call.1} parent=5 // pred_check_branch
        %155 = sbr.rel (%p153) target = $region24
      $region23: #{tpu_custom_call.1} parent=5 // pred_region
        // Predicated region
        $region25: #{tpu_custom_call.1} parent=23 // pred_check
          %p156 = pneg %p31
        $region26: #{tpu_custom_call.1} parent=23 // pred_check_branch
          %158 = sbr.rel (%p156) target = $region28
        $region27: #{tpu_custom_call.1} parent=23 // pred_region
          %s159 = smul.u32 13, %s11
          %s160 = ssub.s32 25, %s159
          %p161 = scmp.lt.s32.totalorder %s160, 13
          %s162 = scalar_select %p161, %s160, 13
          %s163 = smul.u32 128, %s162
          %p164 = scmp.lt.s32.totalorder %s159, 24
          %s165 = scalar_select %p164, %s159, 24
          %s166 = smul.addr %s165, 8
          %s167 = scalar_lea.vmem %s0, %s166
          %s168 = smul.u32 13, %s11
          %s169 = ssub.s32 25, %s168
          %p170 = scmp.lt.s32.totalorder %s169, 13
          %s171 = scalar_select %p170, %s169, 13
          %s172 = smul.u32 128, %s171
        $region28: #{tpu_custom_call.1} parent=23 // pred_fallthru
          _
      $region24: #{tpu_custom_call.1} parent=5 // pred_fallthru
        _
      %p173 = scmp.le.s32.totalorder 1, %s11
      %p174 = scmp.lt.s32.totalorder %s11, 3
      %p175 = pnand %p173, %p174
      %p176 = pneg %p175
      // Predicated region
      $region29: #{tpu_custom_call.1} parent=5 // pred_check
        _
      $region30: #{tpu_custom_call.1} parent=5 // pred_check_branch
        %178 = sbr.rel (%p175) target = $region32
      $region31: #{tpu_custom_call.1} parent=5 // pred_region
        %s179 = ssub.s32 %s11, 1
        %s180 = smul.u32 13, %s16
        %s181 = ssub.s32 25, %s180
        %p182 = scmp.lt.s32.totalorder %s181, 13
        %s183 = scalar_select %p182, %s181, 13
        %s184 = smul.u32 128, %s183
        %p185 = scmp.lt.s32.totalorder %s180, 24
        %s186 = scalar_select %p185, %s180, 24
        %s187 = smul.addr %s186, 8
        %s188 = scalar_lea.vmem %s0, %s187
        %p189 = pneg %p37
        %p190 = pneg %p34
        %p191 = pneg %p58
        %p192 = pneg %p55
        %p193 = pneg %p79
        %p194 = pneg %p76
        %p195 = pneg %p105
        %p196 = pneg %p102
        %s197 = sand.u32 %s92, 1
        %s198 = sand.u32 %s92, 1
        %s199 = smul.addr %s198, 104
        %s200 = scalar_lea.vmem [#allocation2], %s199
        %p201 = pneg %p131
        %p202 = pneg %p128
        %s203 = sand.u32 %s118, 1
        %s204 = sand.u32 %s118, 1
        %s205 = smul.addr %s204, 104
        %s206 = scalar_lea.vmem [#allocation3], %s205
        %s207 = smul.u32 13, %s16
        %s208 = ssub.s32 25, %s207
        %p209 = scmp.lt.s32.totalorder %s208, 13
        %s210 = scalar_select %p209, %s208, 13
        %s211 = smul.u32 128, %s210
        %p212 = scmp.lt.s32.totalorder %s207, 24
        %s213 = scalar_select %p212, %s207, 24
        %s214 = smul.addr %s213, 8
        %s215 = scalar_lea.vmem %s0, %s214
        %s216 = smul.u32 13, %s16
        %s217 = ssub.s32 25, %s216
        %p218 = scmp.lt.s32.totalorder %s217, 13
        %s219 = scalar_select %p218, %s217, 13
        %s220 = smul.u32 128, %s219
        %s221 = smul.u32 13, %s16
        %s222 = ssub.s32 25, %s221
        %p223 = scmp.lt.s32.totalorder %s222, 13
        %s224 = scalar_select %p223, %s222, 13
        %s225 = smul.u32 128, %s224
        %s226 = smul.u32 13, %s16
        %s227 = ssub.s32 25, %s226
        %p228 = scmp.lt.s32.totalorder %s227, 13
        %s229 = scalar_select %p228, %s227, 13
        %s230 = smul.u32 128, %s229
        %v231 = vld [vmem:[%s215] sm:$0xff]
        %v232 = vld [vmem:[%s215 + $0x8] sm:$0xff]
        %v233 = vld [vmem:[%s215 + $0x10] sm:$0xff]
        %v234 = vld [vmem:[%s215 + $0x18] sm:$0xff]
        %v235 = vld [vmem:[%s215 + $0x20] sm:$0xff]
        %v236 = vld [vmem:[%s215 + $0x28] sm:$0xff]
        %v237 = vld [vmem:[%s215 + $0x30] sm:$0xff]
        %v238 = vld [vmem:[%s215 + $0x38] sm:$0xff]
        %v239 = vld [vmem:[%s215 + $0x40] sm:$0xff]
        %v240 = vld [vmem:[%s215 + $0x48] sm:$0xff]
        %v241 = vld [vmem:[%s215 + $0x50] sm:$0xff]
        %v242 = vld [vmem:[%s215 + $0x58] sm:$0xff]
        %v243 = vld [vmem:[%s215 + $0x60] sm:$0xff]
        %v244 = vld [vmem:[%s1] sm:$0xff]
        %v245 = vld [vmem:[%s1 + $0x8] sm:$0xff]
        %v246 = vld [vmem:[%s1 + $0x10] sm:$0xff]
        %v247 = vld [vmem:[%s1 + $0x18] sm:$0xff]
        %v248 = vld [vmem:[%s1 + $0x20] sm:$0xff]
        %v249 = vld [vmem:[%s1 + $0x28] sm:$0xff]
        %v250 = vld [vmem:[%s1 + $0x30] sm:$0xff]
        %v251 = vld [vmem:[%s1 + $0x38] sm:$0xff]
        %v252 = vld [vmem:[%s2] sm:$0x3]
        %v254 = vlaneseq
        %v255 = vshrl.u32 %v254, 7
        %v256 = vsub.s32 0, %v255
        %v257 = vrot.slane %v252, %v256
        %v258 = vlaneseq
        %v259 = vshrl.u32 %v258, 7
        %v260 = vsub.s32 1, %v259
        %v261 = vrot.slane %v252, %v260
        %vm264 = vcmask 261120
        %v266 = vsel %vm264, %v231, 0
        %v269 = vsel %vm264, %v232, 0
        %v272 = vsel %vm264, %v233, 0
        %v275 = vsel %vm264, %v234, 0
        %v278 = vsel %vm264, %v235, 0
        %v281 = vsel %vm264, %v236, 0
        %v284 = vsel %vm264, %v237, 0
        %v287 = vsel %vm264, %v238, 0
        %v290 = vsel %vm264, %v239, 0
        %v293 = vsel %vm264, %v240, 0
        %v296 = vsel %vm264, %v241, 0
        %v299 = vsel %vm264, %v242, 0
        %v302 = vsel %vm264, %v243, 0
        %304 = vmatprep.subr.mxu0 %v245
        %305 = vmatpush1.msra.mxu0 %v244
        %306 = vmatprep.subr.mxu0 %v247
        %307 = vmatpush1.msra.mxu0 %v246
        %308 = vmatprep.subr.mxu0 %v249
        %309 = vmatpush1.msra.mxu0 %v248
        %310 = vmatprep.subr.mxu0 %v251
        %311 = vmatpush1.msra.mxu0 %v250
        %312 = vmatprep.subr.mxu0 0.0
        %313 = vmatpush1.msra.mxu0 0.0
        %314 = vmatprep.subr.mxu0 0.0
        %315 = vmatpush1.msra.mxu0 0.0
        %316 = vmatprep.subr.mxu0 0.0
        %317 = vmatpush1.msra.mxu0 0.0
        %318 = vmatprep.subr.mxu0 0.0
        %319 = vmatpush1.msra.mxu0 0.0
        %320 = vmatprep.subr.mxu0 0.0
        %321 = vmatpush1.msra.mxu0 0.0
        %322 = vmatprep.subr.mxu0 0.0
        %323 = vmatpush1.msra.mxu0 0.0
        %324 = vmatprep.subr.mxu0 0.0
        %325 = vmatpush1.msra.mxu0 0.0
        %326 = vmatprep.subr.mxu0 0.0
        %327 = vmatpush1.msra.mxu0 0.0
        %328 = vmatprep.subr.mxu0 0.0
        %329 = vmatpush1.msra.mxu0 0.0
        %330 = vmatprep.subr.mxu0 0.0
        %331 = vmatpush1.msra.mxu0 0.0
        %332 = vmatprep.subr.mxu0 0.0
        %333 = vmatpush1.msra.mxu0 0.0
        %334 = vmatprep.subr.mxu0 0.0
        %335 = vmatpush1.msra.mxu0 0.0
        %336 = vmatprep.subr.mxu0 0.0
        %337 = vmatpush1.msra.mxu0 0.0
        %338 = vmatprep.subr.mxu0 0.0
        %339 = vmatpush1.msra.mxu0 0.0
        %340 = vmatprep.subr.mxu0 0.0
        %341 = vmatpush1.msra.mxu0 0.0
        %342 = vmatprep.subr.mxu0 0.0
        %343 = vmatpush1.msra.mxu0 0.0
        %344 = vmatprep.subr.mxu0 0.0
        %345 = vmatpush1.msra.mxu0 0.0
        %346 = vmatprep.subr.mxu0 0.0
        %347 = vmatpush1.msra.mxu0 0.0
        %348 = vmatprep.subr.mxu0 0.0
        %349 = vmatpush1.msra.mxu0 0.0
        %350 = vmatprep.subr.mxu0 0.0
        %351 = vmatpush1.msra.mxu0 0.0
        %352 = vmatprep.subr.mxu0 0.0
        %353 = vmatpush1.msra.mxu0 0.0
        %354 = vmatprep.subr.mxu0 0.0
        %355 = vmatpush1.msra.mxu0 0.0
        %356 = vmatprep.subr.mxu0 0.0
        %357 = vmatpush1.msra.mxu0 0.0
        %358 = vmatprep.subr.mxu0 0.0
        %359 = vmatpush1.msra.mxu0 0.0
        %360 = vmatprep.subr.mxu0 0.0
        %361 = vmatpush1.msra.mxu0 0.0
        %362 = vmatprep.subr.mxu0 0.0
        %363 = vmatpush1.msra.mxu0 0.0
        %364 = vmatprep.subr.mxu0 0.0
        %365 = vmatpush1.msra.mxu0 0.0
        %366 = vmatprep.subr.mxu0 0.0
        %367 = vmatpush1.msra.mxu0 0.0
        %368 = vmatprep.mubr.f32.mxu0 0.0
        %369 = vmatmul.mubr.f32.gmra.mrb[0].mxu0 %v266
        %v370 = vpop.f32.mrb[0].mxu0
        %v371 = vadd.f32 %v257, %v370
        %v372 = vpop.f32.mrb[0].mxu0
        %v373 = vadd.f32 %v261, %v372
        %374 = vmatprep.mubr.f32.mxu0 0.0
        %375 = vmatmul.mubr.f32.gmra.mrb[0].mxu0 %v269
        %v376 = vpop.f32.mrb[0].mxu0
        %v377 = vadd.f32 %v257, %v376
        %v378 = vpop.f32.mrb[0].mxu0
        %v379 = vadd.f32 %v261, %v378
        %380 = vmatprep.mubr.f32.mxu0 0.0
        %381 = vmatmul.mubr.f32.gmra.mrb[0].mxu0 %v272
        %v382 = vpop.f32.mrb[0].mxu0
        %v383 = vadd.f32 %v257, %v382
        %v384 = vpop.f32.mrb[0].mxu0
        %v385 = vadd.f32 %v261, %v384
        %386 = vmatprep.mubr.f32.mxu0 0.0
        %387 = vmatmul.mubr.f32.gmra.mrb[0].mxu0 %v275
        %v388 = vpop.f32.mrb[0].mxu0
        %v389 = vadd.f32 %v257, %v388
        %v390 = vpop.f32.mrb[0].mxu0
        %v391 = vadd.f32 %v261, %v390
        %392 = vmatprep.mubr.f32.mxu0 0.0
        %393 = vmatmul.mubr.f32.gmra.mrb[0].mxu0 %v278
        %v394 = vpop.f32.mrb[0].mxu0
        %v395 = vadd.f32 %v257, %v394
        %v396 = vpop.f32.mrb[0].mxu0
        %v397 = vadd.f32 %v261, %v396
        %398 = vmatprep.mubr.f32.mxu0 0.0
        %399 = vmatmul.mubr.f32.gmra.mrb[0].mxu0 %v281
        %v400 = vpop.f32.mrb[0].mxu0
        %v401 = vadd.f32 %v257, %v400
        %v402 = vpop.f32.mrb[0].mxu0
        %v403 = vadd.f32 %v261, %v402
        %404 = vmatprep.mubr.f32.mxu0 0.0
        %405 = vmatmul.mubr.f32.gmra.mrb[0].mxu0 %v284
        %v406 = vpop.f32.mrb[0].mxu0
        %v407 = vadd.f32 %v257, %v406
        %v408 = vpop.f32.mrb[0].mxu0
        %v409 = vadd.f32 %v261, %v408
        %410 = vmatprep.mubr.f32.mxu0 0.0
        %411 = vmatmul.mubr.f32.gmra.mrb[0].mxu0 %v287
        %v412 = vpop.f32.mrb[0].mxu0
        %v413 = vadd.f32 %v257, %v412
        %v414 = vpop.f32.mrb[0].mxu0
        %v415 = vadd.f32 %v261, %v414
        %416 = vmatprep.mubr.f32.mxu0 0.0
        %417 = vmatmul.mubr.f32.gmra.mrb[0].mxu0 %v290
        %v418 = vpop.f32.mrb[0].mxu0
        %v419 = vadd.f32 %v257, %v418
        %v420 = vpop.f32.mrb[0].mxu0
        %v421 = vadd.f32 %v261, %v420
        %422 = vmatprep.mubr.f32.mxu0 0.0
        %423 = vmatmul.mubr.f32.gmra.mrb[0].mxu0 %v293
        %v424 = vpop.f32.mrb[0].mxu0
        %v425 = vadd.f32 %v257, %v424
        %v426 = vpop.f32.mrb[0].mxu0
        %v427 = vadd.f32 %v261, %v426
        %428 = vmatprep.mubr.f32.mxu0 0.0
        %429 = vmatmul.mubr.f32.gmra.mrb[0].mxu0 %v296
        %v430 = vpop.f32.mrb[0].mxu0
        %v431 = vadd.f32 %v257, %v430
        %v432 = vpop.f32.mrb[0].mxu0
        %v433 = vadd.f32 %v261, %v432
        %434 = vmatprep.mubr.f32.mxu0 0.0
        %435 = vmatmul.mubr.f32.gmra.mrb[0].mxu0 %v299
        %v436 = vpop.f32.mrb[0].mxu0
        %v437 = vadd.f32 %v257, %v436
        %v438 = vpop.f32.mrb[0].mxu0
        %v439 = vadd.f32 %v261, %v438
        %440 = vmatprep.mubr.f32.mxu0 0.0
        %441 = vmatmul.mubr.f32.gmra.mrb[0].mxu0 %v302
        %v442 = vpop.f32.mrb[0].mxu0
        %v443 = vadd.f32 %v257, %v442
        %v444 = vpop.f32.mrb[0].mxu0
        %v445 = vadd.f32 %v261, %v444
        %446 = vdwg.mxu0
        %v447 = vxor.u32 %v373, 2147483648
        %v448 = vxor.u32 %v379, 2147483648
        %v449 = vxor.u32 %v385, 2147483648
        %v450 = vxor.u32 %v391, 2147483648
        %v451 = vxor.u32 %v397, 2147483648
        %v452 = vxor.u32 %v403, 2147483648
        %v453 = vxor.u32 %v409, 2147483648
        %v454 = vxor.u32 %v415, 2147483648
        %v455 = vxor.u32 %v421, 2147483648
        %v456 = vxor.u32 %v427, 2147483648
        %v457 = vxor.u32 %v433, 2147483648
        %v458 = vxor.u32 %v439, 2147483648
        %v459 = vxor.u32 %v445, 2147483648
        %v460 = vmul.f32 %v447, 1.442695
        %v461 = vpow.pop %v460
        %v462 = vmul.f32 %v448, 1.442695
        %v463 = vpow.pop %v462
        %v464 = vmul.f32 %v449, 1.442695
        %v465 = vpow.pop %v464
        %v466 = vmul.f32 %v450, 1.442695
        %v467 = vpow.pop %v466
        %v468 = vmul.f32 %v451, 1.442695
        %v469 = vpow.pop %v468
        %v470 = vmul.f32 %v452, 1.442695
        %v471 = vpow.pop %v470
        %v472 = vmul.f32 %v453, 1.442695
        %v473 = vpow.pop %v472
        %v474 = vmul.f32 %v454, 1.442695
        %v475 = vpow.pop %v474
        %v476 = vmul.f32 %v455, 1.442695
        %v477 = vpow.pop %v476
        %v478 = vmul.f32 %v456, 1.442695
        %v479 = vpow.pop %v478
        %v480 = vmul.f32 %v457, 1.442695
        %v481 = vpow.pop %v480
        %v482 = vmul.f32 %v458, 1.442695
        %v483 = vpow.pop %v482
        %v484 = vmul.f32 %v459, 1.442695
        %v485 = vpow.pop %v484
        %v486 = vadd.f32 %v461, 1.0
        %v487 = vadd.f32 %v463, 1.0
        %v488 = vadd.f32 %v465, 1.0
        %v489 = vadd.f32 %v467, 1.0
        %v490 = vadd.f32 %v469, 1.0
        %v491 = vadd.f32 %v471, 1.0
        %v492 = vadd.f32 %v473, 1.0
        %v493 = vadd.f32 %v475, 1.0
        %v494 = vadd.f32 %v477, 1.0
        %v495 = vadd.f32 %v479, 1.0
        %v496 = vadd.f32 %v481, 1.0
        %v497 = vadd.f32 %v483, 1.0
        %v498 = vadd.f32 %v485, 1.0
        %v499 = vrcp.pop %v486
        %v500 = vmul.f32 1.0, %v499
        %v501 = vrcp.pop %v487
        %v502 = vmul.f32 1.0, %v501
        %v503 = vrcp.pop %v488
        %v504 = vmul.f32 1.0, %v503
        %v505 = vrcp.pop %v489
        %v506 = vmul.f32 1.0, %v505
        %v507 = vrcp.pop %v490
        %v508 = vmul.f32 1.0, %v507
        %v509 = vrcp.pop %v491
        %v510 = vmul.f32 1.0, %v509
        %v511 = vrcp.pop %v492
        %v512 = vmul.f32 1.0, %v511
        %v513 = vrcp.pop %v493
        %v514 = vmul.f32 1.0, %v513
        %v515 = vrcp.pop %v494
        %v516 = vmul.f32 1.0, %v515
        %v517 = vrcp.pop %v495
        %v518 = vmul.f32 1.0, %v517
        %v519 = vrcp.pop %v496
        %v520 = vmul.f32 1.0, %v519
        %v521 = vrcp.pop %v497
        %v522 = vmul.f32 1.0, %v521
        %v523 = vrcp.pop %v498
        %v524 = vmul.f32 1.0, %v523
        %v525 = vtanh.pop %v371
        %v526 = vtanh.pop %v377
        %v527 = vtanh.pop %v383
        %v528 = vtanh.pop %v389
        %v529 = vtanh.pop %v395
        %v530 = vtanh.pop %v401
        %v531 = vtanh.pop %v407
        %v532 = vtanh.pop %v413
        %v533 = vtanh.pop %v419
        %v534 = vtanh.pop %v425
        %v535 = vtanh.pop %v431
        %v536 = vtanh.pop %v437
        %v537 = vtanh.pop %v443
        %v538 = vmul.f32 %v500, %v525
        %v539 = vmul.f32 %v502, %v526
        %v540 = vmul.f32 %v504, %v527
        %v541 = vmul.f32 %v506, %v528
        %v542 = vmul.f32 %v508, %v529
        %v543 = vmul.f32 %v510, %v530
        %v544 = vmul.f32 %v512, %v531
        %v545 = vmul.f32 %v514, %v532
        %v546 = vmul.f32 %v516, %v533
        %v547 = vmul.f32 %v518, %v534
        %v548 = vmul.f32 %v520, %v535
        %v549 = vmul.f32 %v522, %v536
        %v550 = vmul.f32 %v524, %v537
        %551 = vst.msk [vmem:[%s200] sm:$0xff] %vm264, %v371
        %552 = vst.msk [vmem:[%s200 + $0x8] sm:$0xff] %vm264, %v377
        %553 = vst.msk [vmem:[%s200 + $0x10] sm:$0xff] %vm264, %v383
        %554 = vst.msk [vmem:[%s200 + $0x18] sm:$0xff] %vm264, %v389
        %555 = vst.msk [vmem:[%s200 + $0x20] sm:$0xff] %vm264, %v395
        %556 = vst.msk [vmem:[%s200 + $0x28] sm:$0xff] %vm264, %v401
        %557 = vst.msk [vmem:[%s200 + $0x30] sm:$0xff] %vm264, %v407
        %558 = vst.msk [vmem:[%s200 + $0x38] sm:$0xff] %vm264, %v413
        %559 = vst.msk [vmem:[%s200 + $0x40] sm:$0xff] %vm264, %v419
        %560 = vst.msk [vmem:[%s200 + $0x48] sm:$0xff] %vm264, %v425
        %561 = vst.msk [vmem:[%s200 + $0x50] sm:$0xff] %vm264, %v431
        %562 = vst.msk [vmem:[%s200 + $0x58] sm:$0xff] %vm264, %v437
        %563 = vst.msk [vmem:[%s200 + $0x60] sm:$0xff] %vm264, %v443
        %564 = vst.msk [vmem:[%s206] sm:$0xff] %vm264, %v538
        %565 = vst.msk [vmem:[%s206 + $0x8] sm:$0xff] %vm264, %v539
        %566 = vst.msk [vmem:[%s206 + $0x10] sm:$0xff] %vm264, %v540
        %567 = vst.msk [vmem:[%s206 + $0x18] sm:$0xff] %vm264, %v541
        %568 = vst.msk [vmem:[%s206 + $0x20] sm:$0xff] %vm264, %v542
        %569 = vst.msk [vmem:[%s206 + $0x28] sm:$0xff] %vm264, %v543
        %570 = vst.msk [vmem:[%s206 + $0x30] sm:$0xff] %vm264, %v544
        %571 = vst.msk [vmem:[%s206 + $0x38] sm:$0xff] %vm264, %v545
        %572 = vst.msk [vmem:[%s206 + $0x40] sm:$0xff] %vm264, %v546
        %573 = vst.msk [vmem:[%s206 + $0x48] sm:$0xff] %vm264, %v547
        %574 = vst.msk [vmem:[%s206 + $0x50] sm:$0xff] %vm264, %v548
        %575 = vst.msk [vmem:[%s206 + $0x58] sm:$0xff] %vm264, %v549
        %576 = vst.msk [vmem:[%s206 + $0x60] sm:$0xff] %vm264, %v550
        %s577 = sand.u32 %s92, 1
        %s578 = sand.u32 %s92, 1
        %s579 = smul.addr %s578, 104
        %s580 = scalar_lea.vmem [#allocation2], %s579
        %s581 = sand.u32 %s118, 1
        %s582 = sand.u32 %s118, 1
        %s583 = smul.addr %s582, 104
        %s584 = scalar_lea.vmem [#allocation3], %s583
        // Predicated region
        $region33: #{tpu_custom_call.1} parent=31 // pred_check
          %p585 = pneg %p102
        $region34: #{tpu_custom_call.1} parent=31 // pred_check_branch
          %587 = sbr.rel (%p585) target = $region36
        $region35: #{tpu_custom_call.1} parent=31 // pred_region
          %s588 = smul.u32 13, %s16
          %s589 = ssub.s32 25, %s588
          %p590 = scmp.lt.s32.totalorder %s589, 13
          %s591 = scalar_select %p590, %s589, 13
          %s592 = smul.u32 128, %s591
          %p593 = scmp.ne.s32.totalorder 0, %s592
          %s594 = smul.addr %s588, 8
          %s595 = scalar_lea.vmem %s3, %s594
          // Predicated region
          $region37: #{tpu_custom_call.1} parent=35 // pred_check
            %p596 = pneg %p593
          $region38: #{tpu_custom_call.1} parent=35 // pred_check_branch
            %598 = sbr.rel (%p596) target = $region40
          $region39: #{tpu_custom_call.1} parent=35 // pred_region
            // Predicated region
            $region41: #{tpu_custom_call.1} parent=39 // pred_check
              _
            $region42: #{tpu_custom_call.1} parent=39 // pred_check_branch
              %600 = sbr.rel (0) target = $region44
            $region43: #{tpu_custom_call.1} parent=39 // pred_region
              // Predicated region
              $region63: #{tpu_custom_call.1} parent=43 // pred_check
                _
              $region64: #{tpu_custom_call.1} parent=43 // pred_check_branch
                %674 = sbr.rel (0) target = $region66
              $region65: #{tpu_custom_call.1} parent=43 // pred_region
                %s675 = sdiv.u32.pop %s591, 13
                %s676 = srem.u32.pop %s591, 13
                // While loop
                $region67: #{tpu_custom_call.1} parent=65 // loop_pre_header
                  _
                $region68: #{tpu_custom_call.1} parent=65 // loop_header
                  %s678 = sphi 0, %s680
                  %p679 = scmp.ge.s32.totalorder %s678, %s675
                  %s683 = sphi 0, %s714
                  %s684 = sphi %s580, %s717
                  %s685 = sphi %s595, %s718
                $region69: #{tpu_custom_call.1} parent=65 // loop_header_branch
                  %682 = sbr.rel (%p679) target = $region73
                $region70: #{tpu_custom_call.1} parent=65 // loop_body
                  %v686 = vld [vmem:[%s684] sm:$0xff]
                  %687 = vst [vmem:[%s685] sm:$0xff] %v686
                  %v688 = vld [vmem:[%s684 + $0x8] sm:$0xff]
                  %689 = vst [vmem:[%s685 + $0x8] sm:$0xff] %v688
                  %v690 = vld [vmem:[%s684 + $0x10] sm:$0xff]
                  %691 = vst [vmem:[%s685 + $0x10] sm:$0xff] %v690
                  %v692 = vld [vmem:[%s684 + $0x18] sm:$0xff]
                  %693 = vst [vmem:[%s685 + $0x18] sm:$0xff] %v692
                  %v694 = vld [vmem:[%s684 + $0x20] sm:$0xff]
                  %695 = vst [vmem:[%s685 + $0x20] sm:$0xff] %v694
                  %v696 = vld [vmem:[%s684 + $0x28] sm:$0xff]
                  %697 = vst [vmem:[%s685 + $0x28] sm:$0xff] %v696
                  %v698 = vld [vmem:[%s684 + $0x30] sm:$0xff]
                  %699 = vst [vmem:[%s685 + $0x30] sm:$0xff] %v698
                  %v700 = vld [vmem:[%s684 + $0x38] sm:$0xff]
                  %701 = vst [vmem:[%s685 + $0x38] sm:$0xff] %v700
                  %v702 = vld [vmem:[%s684 + $0x40] sm:$0xff]
                  %703 = vst [vmem:[%s685 + $0x40] sm:$0xff] %v702
                  %v704 = vld [vmem:[%s684 + $0x48] sm:$0xff]
                  %705 = vst [vmem:[%s685 + $0x48] sm:$0xff] %v704
                  %v706 = vld [vmem:[%s684 + $0x50] sm:$0xff]
                  %707 = vst [vmem:[%s685 + $0x50] sm:$0xff] %v706
                  %v708 = vld [vmem:[%s684 + $0x58] sm:$0xff]
                  %709 = vst [vmem:[%s685 + $0x58] sm:$0xff] %v708
                  %v710 = vld [vmem:[%s684 + $0x60] sm:$0xff]
                  %711 = vst [vmem:[%s685 + $0x60] sm:$0xff] %v710
                  %s712 = sadd.s32 1, %s683
                  %p713 = scmp.ge.s32.totalorder %s712, %s675
                  %s714 = scalar_select %p713, 0, %s712
                  %s715 = smul.u32 %s714, 104
                  %s716 = smul.u32 %s714, 104
                  %s717 = scalar_lea.vmem %s580, %s715 [#allocation2]
                  %s718 = scalar_lea.vmem %s595, %s716
                $region71: #{tpu_custom_call.1} parent=65 // loop_footer
                  %s680 = sadd.s32 %s678, 1
                $region72: #{tpu_custom_call.1} parent=65 // loop_footer_branch
                  %677 = sbr.rel target = $region68
                $region73: #{tpu_custom_call.1} parent=65 // loop_exit
                  _
                %s719 = sdiv.u32.pop %s591, 13
                %s720 = srem.u32.pop %s591, 13
                %s721 = smul.u32 %s719, 13
                %s722 = smul.u32 8, %s721
                %s723 = scalar_lea.vmem %s580, %s722 [#allocation2]
                %s724 = smul.u32 8, %s721
                %s725 = scalar_lea.vmem %s595, %s724
                // While loop
                $region74: #{tpu_custom_call.1} parent=65 // loop_pre_header
                  _
                $region75: #{tpu_custom_call.1} parent=65 // loop_header
                  %s727 = sphi 0, %s729
                  %p728 = scmp.ge.s32.totalorder %s727, %s720
                  %s732 = sphi 0, %s739
                  %s733 = sphi %s723, %s742
                  %s734 = sphi %s725, %s743
                $region76: #{tpu_custom_call.1} parent=65 // loop_header_branch
                  %731 = sbr.rel (%p728) target = $region80
                $region77: #{tpu_custom_call.1} parent=65 // loop_body
                  %v735 = vld [vmem:[%s733] sm:$0xff]
                  %736 = vst [vmem:[%s734] sm:$0xff] %v735
                  %s737 = sadd.s32 1, %s732
                  %p738 = scmp.ge.s32.totalorder %s737, %s720
                  %s739 = scalar_select %p738, 0, %s737
                  %s740 = smul.u32 %s739, 8
                  %s741 = smul.u32 %s739, 8
                  %s742 = scalar_lea.vmem %s723, %s740 [#allocation2]
                  %s743 = scalar_lea.vmem %s725, %s741
                $region78: #{tpu_custom_call.1} parent=65 // loop_footer
                  %s729 = sadd.s32 %s727, 1
                $region79: #{tpu_custom_call.1} parent=65 // loop_footer_branch
                  %726 = sbr.rel target = $region75
                $region80: #{tpu_custom_call.1} parent=65 // loop_exit
                  _
              $region66: #{tpu_custom_call.1} parent=43 // pred_fallthru
                _
              // Predicated region
              $region81: #{tpu_custom_call.1} parent=43 // pred_check
                _
              $region82: #{tpu_custom_call.1} parent=43 // pred_check_branch
                %745 = sbr.rel target = $region84
              $region83: #{tpu_custom_call.1} parent=43 // pred_region
                _
              $region84: #{tpu_custom_call.1} parent=43 // pred_fallthru
                _
            $region44: #{tpu_custom_call.1} parent=39 // pred_fallthru
              _
            // Predicated region
            $region45: #{tpu_custom_call.1} parent=39 // pred_check
              _
            $region46: #{tpu_custom_call.1} parent=39 // pred_check_branch
              %602 = sbr.rel target = $region48
            $region47: #{tpu_custom_call.1} parent=39 // pred_region
              %s604 = sdiv.u32.pop %s591, 13
              %s605 = srem.u32.pop %s591, 13
              // While loop
              $region49: #{tpu_custom_call.1} parent=47 // loop_pre_header
                _
              $region50: #{tpu_custom_call.1} parent=47 // loop_header
                %s607 = sphi 0, %s609
                %p608 = scmp.ge.s32.totalorder %s607, %s604
                %s612 = sphi 0, %s643
                %s613 = sphi %s580, %s646
                %s614 = sphi %s595, %s647
              $region51: #{tpu_custom_call.1} parent=47 // loop_header_branch
                %611 = sbr.rel (%p608) target = $region55
              $region52: #{tpu_custom_call.1} parent=47 // loop_body
                %v615 = vld [vmem:[%s613] sm:$0xff]
                %616 = vst [vmem:[%s614] sm:$0xff] %v615
                %v617 = vld [vmem:[%s613 + $0x8] sm:$0xff]
                %618 = vst [vmem:[%s614 + $0x8] sm:$0xff] %v617
                %v619 = vld [vmem:[%s613 + $0x10] sm:$0xff]
                %620 = vst [vmem:[%s614 + $0x10] sm:$0xff] %v619
                %v621 = vld [vmem:[%s613 + $0x18] sm:$0xff]
                %622 = vst [vmem:[%s614 + $0x18] sm:$0xff] %v621
                %v623 = vld [vmem:[%s613 + $0x20] sm:$0xff]
                %624 = vst [vmem:[%s614 + $0x20] sm:$0xff] %v623
                %v625 = vld [vmem:[%s613 + $0x28] sm:$0xff]
                %626 = vst [vmem:[%s614 + $0x28] sm:$0xff] %v625
                %v627 = vld [vmem:[%s613 + $0x30] sm:$0xff]
                %628 = vst [vmem:[%s614 + $0x30] sm:$0xff] %v627
                %v629 = vld [vmem:[%s613 + $0x38] sm:$0xff]
                %630 = vst [vmem:[%s614 + $0x38] sm:$0xff] %v629
                %v631 = vld [vmem:[%s613 + $0x40] sm:$0xff]
                %632 = vst [vmem:[%s614 + $0x40] sm:$0xff] %v631
                %v633 = vld [vmem:[%s613 + $0x48] sm:$0xff]
                %634 = vst [vmem:[%s614 + $0x48] sm:$0xff] %v633
                %v635 = vld [vmem:[%s613 + $0x50] sm:$0xff]
                %636 = vst [vmem:[%s614 + $0x50] sm:$0xff] %v635
                %v637 = vld [vmem:[%s613 + $0x58] sm:$0xff]
                %638 = vst [vmem:[%s614 + $0x58] sm:$0xff] %v637
                %v639 = vld [vmem:[%s613 + $0x60] sm:$0xff]
                %640 = vst [vmem:[%s614 + $0x60] sm:$0xff] %v639
                %s641 = sadd.s32 1, %s612
                %p642 = scmp.ge.s32.totalorder %s641, %s604
                %s643 = scalar_select %p642, 0, %s641
                %s644 = smul.u32 %s643, 104
                %s645 = smul.u32 %s643, 104
                %s646 = scalar_lea.vmem %s580, %s644 [#allocation2]
                %s647 = scalar_lea.vmem %s595, %s645
              $region53: #{tpu_custom_call.1} parent=47 // loop_footer
                %s609 = sadd.s32 %s607, 1
              $region54: #{tpu_custom_call.1} parent=47 // loop_footer_branch
                %606 = sbr.rel target = $region50
              $region55: #{tpu_custom_call.1} parent=47 // loop_exit
                _
              %s648 = sdiv.u32.pop %s591, 13
              %s649 = srem.u32.pop %s591, 13
              %s650 = smul.u32 %s648, 13
              %s651 = smul.u32 8, %s650
              %s652 = scalar_lea.vmem %s580, %s651 [#allocation2]
              %s653 = smul.u32 8, %s650
              %s654 = scalar_lea.vmem %s595, %s653
              // While loop
              $region56: #{tpu_custom_call.1} parent=47 // loop_pre_header
                _
              $region57: #{tpu_custom_call.1} parent=47 // loop_header
                %s656 = sphi 0, %s658
                %p657 = scmp.ge.s32.totalorder %s656, %s649
                %s661 = sphi 0, %s668
                %s662 = sphi %s652, %s671
                %s663 = sphi %s654, %s672
              $region58: #{tpu_custom_call.1} parent=47 // loop_header_branch
                %660 = sbr.rel (%p657) target = $region62
              $region59: #{tpu_custom_call.1} parent=47 // loop_body
                %v664 = vld [vmem:[%s662] sm:$0xff]
                %665 = vst [vmem:[%s663] sm:$0xff] %v664
                %s666 = sadd.s32 1, %s661
                %p667 = scmp.ge.s32.totalorder %s666, %s649
                %s668 = scalar_select %p667, 0, %s666
                %s669 = smul.u32 %s668, 8
                %s670 = smul.u32 %s668, 8
                %s671 = scalar_lea.vmem %s652, %s669 [#allocation2]
                %s672 = scalar_lea.vmem %s654, %s670
              $region60: #{tpu_custom_call.1} parent=47 // loop_footer
                %s658 = sadd.s32 %s656, 1
              $region61: #{tpu_custom_call.1} parent=47 // loop_footer_branch
                %655 = sbr.rel target = $region57
              $region62: #{tpu_custom_call.1} parent=47 // loop_exit
                _
            $region48: #{tpu_custom_call.1} parent=39 // pred_fallthru
              _
          $region40: #{tpu_custom_call.1} parent=35 // pred_fallthru
            _
          %746 = vnop
        $region36: #{tpu_custom_call.1} parent=31 // pred_fallthru
          _
        // Predicated region
        $region85: #{tpu_custom_call.1} parent=31 // pred_check
          %p747 = pneg %p128
        $region86: #{tpu_custom_call.1} parent=31 // pred_check_branch
          %749 = sbr.rel (%p747) target = $region88
        $region87: #{tpu_custom_call.1} parent=31 // pred_region
          %s750 = smul.u32 13, %s16
          %s751 = ssub.s32 25, %s750
          %p752 = scmp.lt.s32.totalorder %s751, 13
          %s753 = scalar_select %p752, %s751, 13
          %s754 = smul.u32 128, %s753
          %p755 = scmp.ne.s32.totalorder 0, %s754
          %s756 = smul.addr %s750, 8
          %s757 = scalar_lea.vmem %s4, %s756
          // Predicated region
          $region89: #{tpu_custom_call.1} parent=87 // pred_check
            %p758 = pneg %p755
          $region90: #{tpu_custom_call.1} parent=87 // pred_check_branch
            %760 = sbr.rel (%p758) target = $region92
          $region91: #{tpu_custom_call.1} parent=87 // pred_region
            // Predicated region
            $region93: #{tpu_custom_call.1} parent=91 // pred_check
              _
            $region94: #{tpu_custom_call.1} parent=91 // pred_check_branch
              %762 = sbr.rel (0) target = $region96
            $region95: #{tpu_custom_call.1} parent=91 // pred_region
              // Predicated region
              $region115: #{tpu_custom_call.1} parent=95 // pred_check
                _
              $region116: #{tpu_custom_call.1} parent=95 // pred_check_branch
                %836 = sbr.rel (0) target = $region118
              $region117: #{tpu_custom_call.1} parent=95 // pred_region
                %s837 = sdiv.u32.pop %s753, 13
                %s838 = srem.u32.pop %s753, 13
                // While loop
                $region119: #{tpu_custom_call.1} parent=117 // loop_pre_header
                  _
                $region120: #{tpu_custom_call.1} parent=117 // loop_header
                  %s840 = sphi 0, %s842
                  %p841 = scmp.ge.s32.totalorder %s840, %s837
                  %s845 = sphi 0, %s876
                  %s846 = sphi %s584, %s879
                  %s847 = sphi %s757, %s880
                $region121: #{tpu_custom_call.1} parent=117 // loop_header_branch
                  %844 = sbr.rel (%p841) target = $region125
                $region122: #{tpu_custom_call.1} parent=117 // loop_body
                  %v848 = vld [vmem:[%s846] sm:$0xff]
                  %849 = vst [vmem:[%s847] sm:$0xff] %v848
                  %v850 = vld [vmem:[%s846 + $0x8] sm:$0xff]
                  %851 = vst [vmem:[%s847 + $0x8] sm:$0xff] %v850
                  %v852 = vld [vmem:[%s846 + $0x10] sm:$0xff]
                  %853 = vst [vmem:[%s847 + $0x10] sm:$0xff] %v852
                  %v854 = vld [vmem:[%s846 + $0x18] sm:$0xff]
                  %855 = vst [vmem:[%s847 + $0x18] sm:$0xff] %v854
                  %v856 = vld [vmem:[%s846 + $0x20] sm:$0xff]
                  %857 = vst [vmem:[%s847 + $0x20] sm:$0xff] %v856
                  %v858 = vld [vmem:[%s846 + $0x28] sm:$0xff]
                  %859 = vst [vmem:[%s847 + $0x28] sm:$0xff] %v858
                  %v860 = vld [vmem:[%s846 + $0x30] sm:$0xff]
                  %861 = vst [vmem:[%s847 + $0x30] sm:$0xff] %v860
                  %v862 = vld [vmem:[%s846 + $0x38] sm:$0xff]
                  %863 = vst [vmem:[%s847 + $0x38] sm:$0xff] %v862
                  %v864 = vld [vmem:[%s846 + $0x40] sm:$0xff]
                  %865 = vst [vmem:[%s847 + $0x40] sm:$0xff] %v864
                  %v866 = vld [vmem:[%s846 + $0x48] sm:$0xff]
                  %867 = vst [vmem:[%s847 + $0x48] sm:$0xff] %v866
                  %v868 = vld [vmem:[%s846 + $0x50] sm:$0xff]
                  %869 = vst [vmem:[%s847 + $0x50] sm:$0xff] %v868
                  %v870 = vld [vmem:[%s846 + $0x58] sm:$0xff]
                  %871 = vst [vmem:[%s847 + $0x58] sm:$0xff] %v870
                  %v872 = vld [vmem:[%s846 + $0x60] sm:$0xff]
                  %873 = vst [vmem:[%s847 + $0x60] sm:$0xff] %v872
                  %s874 = sadd.s32 1, %s845
                  %p875 = scmp.ge.s32.totalorder %s874, %s837
                  %s876 = scalar_select %p875, 0, %s874
                  %s877 = smul.u32 %s876, 104
                  %s878 = smul.u32 %s876, 104
                  %s879 = scalar_lea.vmem %s584, %s877 [#allocation3]
                  %s880 = scalar_lea.vmem %s757, %s878
                $region123: #{tpu_custom_call.1} parent=117 // loop_footer
                  %s842 = sadd.s32 %s840, 1
                $region124: #{tpu_custom_call.1} parent=117 // loop_footer_branch
                  %839 = sbr.rel target = $region120
                $region125: #{tpu_custom_call.1} parent=117 // loop_exit
                  _
                %s881 = sdiv.u32.pop %s753, 13
                %s882 = srem.u32.pop %s753, 13
                %s883 = smul.u32 %s881, 13
                %s884 = smul.u32 8, %s883
                %s885 = scalar_lea.vmem %s584, %s884 [#allocation3]
                %s886 = smul.u32 8, %s883
                %s887 = scalar_lea.vmem %s757, %s886
                // While loop
                $region126: #{tpu_custom_call.1} parent=117 // loop_pre_header
                  _
                $region127: #{tpu_custom_call.1} parent=117 // loop_header
                  %s889 = sphi 0, %s891
                  %p890 = scmp.ge.s32.totalorder %s889, %s882
                  %s894 = sphi 0, %s901
                  %s895 = sphi %s885, %s904
                  %s896 = sphi %s887, %s905
                $region128: #{tpu_custom_call.1} parent=117 // loop_header_branch
                  %893 = sbr.rel (%p890) target = $region132
                $region129: #{tpu_custom_call.1} parent=117 // loop_body
                  %v897 = vld [vmem:[%s895] sm:$0xff]
                  %898 = vst [vmem:[%s896] sm:$0xff] %v897
                  %s899 = sadd.s32 1, %s894
                  %p900 = scmp.ge.s32.totalorder %s899, %s882
                  %s901 = scalar_select %p900, 0, %s899
                  %s902 = smul.u32 %s901, 8
                  %s903 = smul.u32 %s901, 8
                  %s904 = scalar_lea.vmem %s885, %s902 [#allocation3]
                  %s905 = scalar_lea.vmem %s887, %s903
                $region130: #{tpu_custom_call.1} parent=117 // loop_footer
                  %s891 = sadd.s32 %s889, 1
                $region131: #{tpu_custom_call.1} parent=117 // loop_footer_branch
                  %888 = sbr.rel target = $region127
                $region132: #{tpu_custom_call.1} parent=117 // loop_exit
                  _
              $region118: #{tpu_custom_call.1} parent=95 // pred_fallthru
                _
              // Predicated region
              $region133: #{tpu_custom_call.1} parent=95 // pred_check
                _
              $region134: #{tpu_custom_call.1} parent=95 // pred_check_branch
                %907 = sbr.rel target = $region136
              $region135: #{tpu_custom_call.1} parent=95 // pred_region
                _
              $region136: #{tpu_custom_call.1} parent=95 // pred_fallthru
                _
            $region96: #{tpu_custom_call.1} parent=91 // pred_fallthru
              _
            // Predicated region
            $region97: #{tpu_custom_call.1} parent=91 // pred_check
              _
            $region98: #{tpu_custom_call.1} parent=91 // pred_check_branch
              %764 = sbr.rel target = $region100
            $region99: #{tpu_custom_call.1} parent=91 // pred_region
              %s766 = sdiv.u32.pop %s753, 13
              %s767 = srem.u32.pop %s753, 13
              // While loop
              $region101: #{tpu_custom_call.1} parent=99 // loop_pre_header
                _
              $region102: #{tpu_custom_call.1} parent=99 // loop_header
                %s769 = sphi 0, %s771
                %p770 = scmp.ge.s32.totalorder %s769, %s766
                %s774 = sphi 0, %s805
                %s775 = sphi %s584, %s808
                %s776 = sphi %s757, %s809
              $region103: #{tpu_custom_call.1} parent=99 // loop_header_branch
                %773 = sbr.rel (%p770) target = $region107
              $region104: #{tpu_custom_call.1} parent=99 // loop_body
                %v777 = vld [vmem:[%s775] sm:$0xff]
                %778 = vst [vmem:[%s776] sm:$0xff] %v777
                %v779 = vld [vmem:[%s775 + $0x8] sm:$0xff]
                %780 = vst [vmem:[%s776 + $0x8] sm:$0xff] %v779
                %v781 = vld [vmem:[%s775 + $0x10] sm:$0xff]
                %782 = vst [vmem:[%s776 + $0x10] sm:$0xff] %v781
                %v783 = vld [vmem:[%s775 + $0x18] sm:$0xff]
                %784 = vst [vmem:[%s776 + $0x18] sm:$0xff] %v783
                %v785 = vld [vmem:[%s775 + $0x20] sm:$0xff]
                %786 = vst [vmem:[%s776 + $0x20] sm:$0xff] %v785
                %v787 = vld [vmem:[%s775 + $0x28] sm:$0xff]
                %788 = vst [vmem:[%s776 + $0x28] sm:$0xff] %v787
                %v789 = vld [vmem:[%s775 + $0x30] sm:$0xff]
                %790 = vst [vmem:[%s776 + $0x30] sm:$0xff] %v789
                %v791 = vld [vmem:[%s775 + $0x38] sm:$0xff]
                %792 = vst [vmem:[%s776 + $0x38] sm:$0xff] %v791
                %v793 = vld [vmem:[%s775 + $0x40] sm:$0xff]
                %794 = vst [vmem:[%s776 + $0x40] sm:$0xff] %v793
                %v795 = vld [vmem:[%s775 + $0x48] sm:$0xff]
                %796 = vst [vmem:[%s776 + $0x48] sm:$0xff] %v795
                %v797 = vld [vmem:[%s775 + $0x50] sm:$0xff]
                %798 = vst [vmem:[%s776 + $0x50] sm:$0xff] %v797
                %v799 = vld [vmem:[%s775 + $0x58] sm:$0xff]
                %800 = vst [vmem:[%s776 + $0x58] sm:$0xff] %v799
                %v801 = vld [vmem:[%s775 + $0x60] sm:$0xff]
                %802 = vst [vmem:[%s776 + $0x60] sm:$0xff] %v801
                %s803 = sadd.s32 1, %s774
                %p804 = scmp.ge.s32.totalorder %s803, %s766
                %s805 = scalar_select %p804, 0, %s803
                %s806 = smul.u32 %s805, 104
                %s807 = smul.u32 %s805, 104
                %s808 = scalar_lea.vmem %s584, %s806 [#allocation3]
                %s809 = scalar_lea.vmem %s757, %s807
              $region105: #{tpu_custom_call.1} parent=99 // loop_footer
                %s771 = sadd.s32 %s769, 1
              $region106: #{tpu_custom_call.1} parent=99 // loop_footer_branch
                %768 = sbr.rel target = $region102
              $region107: #{tpu_custom_call.1} parent=99 // loop_exit
                _
              %s810 = sdiv.u32.pop %s753, 13
              %s811 = srem.u32.pop %s753, 13
              %s812 = smul.u32 %s810, 13
              %s813 = smul.u32 8, %s812
              %s814 = scalar_lea.vmem %s584, %s813 [#allocation3]
              %s815 = smul.u32 8, %s812
              %s816 = scalar_lea.vmem %s757, %s815
              // While loop
              $region108: #{tpu_custom_call.1} parent=99 // loop_pre_header
                _
              $region109: #{tpu_custom_call.1} parent=99 // loop_header
                %s818 = sphi 0, %s820
                %p819 = scmp.ge.s32.totalorder %s818, %s811
                %s823 = sphi 0, %s830
                %s824 = sphi %s814, %s833
                %s825 = sphi %s816, %s834
              $region110: #{tpu_custom_call.1} parent=99 // loop_header_branch
                %822 = sbr.rel (%p819) target = $region114
              $region111: #{tpu_custom_call.1} parent=99 // loop_body
                %v826 = vld [vmem:[%s824] sm:$0xff]
                %827 = vst [vmem:[%s825] sm:$0xff] %v826
                %s828 = sadd.s32 1, %s823
                %p829 = scmp.ge.s32.totalorder %s828, %s811
                %s830 = scalar_select %p829, 0, %s828
                %s831 = smul.u32 %s830, 8
                %s832 = smul.u32 %s830, 8
                %s833 = scalar_lea.vmem %s814, %s831 [#allocation3]
                %s834 = scalar_lea.vmem %s816, %s832
              $region112: #{tpu_custom_call.1} parent=99 // loop_footer
                %s820 = sadd.s32 %s818, 1
              $region113: #{tpu_custom_call.1} parent=99 // loop_footer_branch
                %817 = sbr.rel target = $region109
              $region114: #{tpu_custom_call.1} parent=99 // loop_exit
                _
            $region100: #{tpu_custom_call.1} parent=91 // pred_fallthru
              _
          $region92: #{tpu_custom_call.1} parent=87 // pred_fallthru
            _
          %908 = vnop
        $region88: #{tpu_custom_call.1} parent=31 // pred_fallthru
          _
      $region32: #{tpu_custom_call.1} parent=5 // pred_fallthru
        _
      %p909 = scmp.le.s32.totalorder 2, %s11
      // Predicated region
      $region137: #{tpu_custom_call.1} parent=5 // pred_check
        %p910 = pneg %p909
      $region138: #{tpu_custom_call.1} parent=5 // pred_check_branch
        %912 = sbr.rel (%p910) target = $region140
      $region139: #{tpu_custom_call.1} parent=5 // pred_region
        %s913 = ssub.s32 %s11, 2
        // Predicated region
        $region141: #{tpu_custom_call.1} parent=139 // pred_check
          %p914 = pneg %p108
        $region142: #{tpu_custom_call.1} parent=139 // pred_check_branch
          %916 = sbr.rel (%p914) target = $region144
        $region143: #{tpu_custom_call.1} parent=139 // pred_region
          %s917 = sand.u32 %s93, 1
          %s918 = sand.u32 %s93, 1
          %s919 = smul.addr %s918, 104
          %s920 = scalar_lea.vmem [#allocation2], %s919
        $region144: #{tpu_custom_call.1} parent=139 // pred_fallthru
          _
        // Predicated region
        $region145: #{tpu_custom_call.1} parent=139 // pred_check
          %p921 = pneg %p134
        $region146: #{tpu_custom_call.1} parent=139 // pred_check_branch
          %923 = sbr.rel (%p921) target = $region148
        $region147: #{tpu_custom_call.1} parent=139 // pred_region
          %s924 = sand.u32 %s119, 1
          %s925 = sand.u32 %s119, 1
          %s926 = smul.addr %s925, 104
          %s927 = scalar_lea.vmem [#allocation3], %s926
        $region148: #{tpu_custom_call.1} parent=139 // pred_fallthru
          _
      $region140: #{tpu_custom_call.1} parent=5 // pred_fallthru
        _
    $region6: #{tpu_custom_call.1} parent=1 // loop_footer
      %s15 = sadd.s32 1, %s11
    $region7: #{tpu_custom_call.1} parent=1 // loop_footer_branch
      %10 = sbr.rel target = $region3
    $region8: #{tpu_custom_call.1} parent=1 // loop_exit
      _

</llo_original>
